<compile_context>
chip_gen: v7x
topology: tpu7x:2x2x1
jax: 0.10.0
libtpu: 0.0.40
codegen_flags: <defaults>
</compile_context>

<pallas_src>
import functools

import jax
import jax.numpy as jnp
from jax import lax
from jax.experimental import pallas as pl
from jax.experimental.pallas import tpu as pltpu


def _simclr_kernel(x_ref, xp_ref, out_ref, acc_ref, ncol_ref, nrow_ref, *,
                   batch_size, d_total, tk, inv_temp, row_tile, matmul_dtype):
    k = pl.program_id(0)
    nk = pl.num_programs(0)
    n = 2 * batch_size

    @pl.when(k == 0)
    def _init():
        acc_ref[...] = jnp.zeros_like(acc_ref)
        ncol_ref[...] = jnp.zeros_like(ncol_ref)
        nrow_ref[...] = jnp.zeros_like(nrow_ref)

    # Assemble the (N, tk) tile of z = [x; x_pair] in VMEM (no HBM concat).
    zb = jnp.concatenate([x_ref[...], xp_ref[...]], axis=0)

    if d_total % tk != 0:
        # Ragged feature tail: zero out-of-range columns (exact for both the
        # Gram matrix and the norms). Static branch; only emitted if needed.
        col = lax.broadcasted_iota(jnp.int32, zb.shape, 1) + k * tk
        zb = jnp.where(col < d_total, zb, jnp.zeros_like(zb))

    # Gram accumulation on the MXU: contract dim 1 of both operands (no
    # transpose materialized), accumulate in f32.
    zmm = zb if matmul_dtype is None else zb.astype(matmul_dtype)
    acc_ref[...] += lax.dot_general(
        zmm, zmm,
        dimension_numbers=(((1,), (1,)), ((), ())),
        preferred_element_type=jnp.float32)

    # Squared row norms accumulated during the K loop (hidden under MXU
    # slack). Column form (N, 1) via a lane reduce, row form (1, N) via a
    # tiny ones-vector matmul (avoids any N-vector transpose later).
    zf = zb.astype(jnp.float32)
    z2 = zf * zf
    ncol_ref[...] += jnp.sum(z2, axis=1, keepdims=True)
    nrow_ref[...] += lax.dot_general(
        jnp.ones((1, z2.shape[1]), jnp.float32), z2,
        dimension_numbers=(((1,), (1,)), ((), ())),
        preferred_element_type=jnp.float32)

    @pl.when(k == nk - 1)
    def _finalize():
        eps = jnp.float32(1e-12)
        # Column (j) direction scaling as a (1, N) row vector; temperature is
        # folded into the per-row scale inside the chunk loop.
        inv_r = lax.rsqrt(jnp.maximum(nrow_ref[...], eps))          # (1, N)
        num_chunks = n // row_tile

        def body(c, carry):
            lse_sum, pos_sum = carry
            start = pl.multiple_of(c * row_tile, row_tile)
            g = acc_ref[pl.ds(start, row_tile), :]                  # (R, N)
            inv_c = lax.rsqrt(jnp.maximum(
                ncol_ref[pl.ds(start, row_tile), :], eps)) * jnp.float32(inv_temp)
            sim = g * inv_c * inv_r                                  # (R, N)

            row = lax.broadcasted_iota(jnp.int32, (row_tile, n), 0) + start
            col = lax.broadcasted_iota(jnp.int32, (row_tile, n), 1)

            # Positive pairs: only the upper band (col == row + B) is summed;
            # sim is symmetric so the lower band contributes the same amount.
            pos_sum = pos_sum + jnp.sum(
                jnp.where(col == row + batch_size, sim, 0.0))

            # Row-wise logsumexp excluding the diagonal (self-similarity).
            sim_m = jnp.where(col == row, jnp.float32(-1e30), sim)
            m = jnp.max(sim_m, axis=1, keepdims=True)
            s = jnp.sum(jnp.exp(sim_m - m), axis=1, keepdims=True)
            lse_sum = lse_sum + jnp.sum(m + jnp.log(s))
            return lse_sum, pos_sum

        lse_sum, pos_sum = lax.fori_loop(
            0, num_chunks, body, (jnp.float32(0.0), jnp.float32(0.0)))

        loss = (lse_sum - 2.0 * pos_sum) / jnp.float32(n)
        # Lane-dense (1, 128) output: avoids a masked sub-lane-width store.
        out_ref[...] = jnp.broadcast_to(loss, out_ref.shape)


def _pick_row_tile(n):
    for t in (512, 256, 128, 64, 32, 16, 8):
        if t <= n and n % t == 0:
            return t
    return n


def simclr_loss(x, x_pair, temperature, *, matmul_dtype=None):
    """Pallas TPU implementation of SimCLR_Loss.forward(x, x_pair).

    matmul_dtype: optionally cast the MXU operands (e.g. jnp.bfloat16 on
      v6e/v7x for ~2-4x faster Gram accumulation at ~1e-3 loss accuracy);
      None keeps the input dtype (full accuracy).
    """
    b, d = x.shape
    assert x_pair.shape == (b, d)
    n = 2 * b

    # Feature-axis tile: full D if it fits comfortably, else 1024-wide tiles
    # (ragged tail is masked in-kernel, never padded in HBM).
    tk = d if d <= 1024 else 1024
    num_k = (d + tk - 1) // tk
    row_tile = _pick_row_tile(n)

    kernel = functools.partial(
        _simclr_kernel,
        batch_size=b, d_total=d, tk=tk,
        inv_temp=1.0 / float(temperature),
        row_tile=row_tile, matmul_dtype=matmul_dtype)

    # VMEM budget: Gram accumulator + norm scratches + double-buffered input
    # tiles + chunked-epilogue temporaries, with headroom, clamped to ~75% of
    # the per-core VMEM capacity (64 MiB fallback fits every generation).
    itemsize = jnp.dtype(x.dtype).itemsize
    acc_bytes = n * n * 4
    norm_bytes = (n * 128 + 8 * max(n, 128)) * 4
    in_bytes = 2 * 2 * max(b, 8) * max(tk, 128) * itemsize
    epi_bytes = 6 * row_tile * n * 4
    need = acc_bytes + norm_bytes + in_bytes + epi_bytes + 8 * 128 * 4
    try:
        vmem_cap = pltpu.get_tpu_info().vmem_capacity_bytes
    except Exception:
        vmem_cap = 64 * 1024 * 1024
    vmem_limit = int(min(int(vmem_cap * 0.75),
                         max(2 * need, 32 * 1024 * 1024)))

    out = pl.pallas_call(
        kernel,
        out_shape=jax.ShapeDtypeStruct((1, 128), jnp.float32),
        grid_spec=pltpu.PrefetchScalarGridSpec(
            num_scalar_prefetch=0,
            grid=(num_k,),
            in_specs=[pl.BlockSpec((b, tk), lambda k: (0, k)),
                      pl.BlockSpec((b, tk), lambda k: (0, k))],
            out_specs=pl.BlockSpec((1, 128), lambda k: (0, 0)),
            scratch_shapes=[pltpu.VMEM((n, n), jnp.float32),   # Gram accumulator
                            pltpu.VMEM((n, 1), jnp.float32),   # norms, column form
                            pltpu.VMEM((1, n), jnp.float32)],  # norms, row form
        ),
        compiler_params=pltpu.CompilerParams(
            dimension_semantics=("arbitrary",),
            vmem_limit_bytes=vmem_limit),
    )(x, x_pair)
    return out[0, 0]


def _reference_loss(x, x_pair, temperature):
    # Pure-JAX mirror of the torch forward (sim_func = cosine similarity).
    z = jnp.concatenate([x, x_pair], axis=0).astype(jnp.float32)
    b = x.shape[0]
    n = 2 * b
    zn = z / jnp.sqrt(jnp.sum(z * z, axis=1, keepdims=True))
    sim = (zn @ zn.T) / temperature
    idx = jnp.arange(n)
    pos = sim[idx, (idx + b) % n]                       # the two +/-B diagonals
    sim_m = jnp.where(jnp.eye(n, dtype=bool), -jnp.inf, sim)
    lse = jax.scipy.special.logsumexp(sim_m, axis=1)    # over positive + negatives
    return jnp.sum(lse - pos) / n                       # CE(sum) / N, labels = 0


if __name__ == "__main__":
    key = jax.random.PRNGKey(0)
    k1, k2 = jax.random.split(key)
    batch_size, hidden = 8, 32        # N = 16 rows, D = 32 features
    temperature = 0.5
    x = jax.random.normal(k1, (batch_size, hidden), dtype=jnp.float32)
    x_pair = jax.random.normal(k2, (batch_size, hidden), dtype=jnp.float32)

    loss = jax.block_until_ready(simclr_loss(x, x_pair, temperature))
    ref = jax.block_until_ready(_reference_loss(x, x_pair, temperature))

    assert jnp.allclose(loss, ref, atol=1e-4, rtol=1e-4), (loss, ref)
    print("KERNEL_OK")
</pallas_src>

<mosaic_0001>
module attributes {stable_mosaic.version = 11 : i64} {
  func.func @_simclr_kernel(%arg0: i32, %arg1: memref<8x32xf32, #tpu.memory_space<vmem>>, %arg2: memref<8x32xf32, #tpu.memory_space<vmem>>, %arg3: memref<1x128xf32, #tpu.memory_space<vmem>>, %arg4: memref<16x16xf32, #tpu.memory_space<vmem>>, %arg5: memref<16x1xf32, #tpu.memory_space<vmem>>, %arg6: memref<1x16xf32, #tpu.memory_space<vmem>>) attributes {dimension_semantics = [#tpu.dimension_semantics<arbitrary>], iteration_bounds = array<i64: 1>, scalar_prefetch = 0 : i64, scratch_operands = 3 : i64, tpu.core_type = #tpu.core_type<tc>, window_params = [{transform_indices = @transform_0, window_bounds = array<i64: 8, 32>}, {transform_indices = @transform_1, window_bounds = array<i64: 8, 32>}, {pipeline_mode = #tpu.pipeline_mode<synchronous>, transform_indices = @transform_2, window_bounds = array<i64: 1, 128>}]} {
    %c0_i32 = arith.constant 0 : i32
    %0 = arith.cmpi eq, %arg0, %c0_i32 : i32
    %1 = arith.extui %0 : i1 to i32
    %c0_i32_0 = arith.constant 0 : i32
    %2 = arith.cmpi ne, %1, %c0_i32_0 : i32
    scf.if %2 {
      %cst_21 = arith.constant 0.000000e+00 : f32
      %24 = vector.broadcast %cst_21 : f32 to vector<16x16xf32>
      %c0_22 = arith.constant 0 : index
      %c0_23 = arith.constant 0 : index
      %25 = vector.load %arg4[%c0_22, %c0_23] : memref<16x16xf32, #tpu.memory_space<vmem>>, vector<16x16xf32>
      tpu.vector_store %arg4[%c0_22, %c0_23], %24 {strides = array<i32>} : memref<16x16xf32, #tpu.memory_space<vmem>>, vector<16x16xf32>,
      %cst_24 = arith.constant 0.000000e+00 : f32
      %26 = vector.broadcast %cst_24 : f32 to vector<16x1xf32>
      %c0_25 = arith.constant 0 : index
      %c0_26 = arith.constant 0 : index
      %27 = vector.load %arg5[%c0_25, %c0_26] : memref<16x1xf32, #tpu.memory_space<vmem>>, vector<16x1xf32>
      tpu.vector_store %arg5[%c0_25, %c0_26], %26 {strides = array<i32>} : memref<16x1xf32, #tpu.memory_space<vmem>>, vector<16x1xf32>,
      %cst_27 = arith.constant 0.000000e+00 : f32
      %28 = vector.broadcast %cst_27 : f32 to vector<1x16xf32>
      %c0_28 = arith.constant 0 : index
      %c0_29 = arith.constant 0 : index
      %29 = vector.load %arg6[%c0_28, %c0_29] : memref<1x16xf32, #tpu.memory_space<vmem>>, vector<1x16xf32>
      tpu.vector_store %arg6[%c0_28, %c0_29], %28 {strides = array<i32>} : memref<1x16xf32, #tpu.memory_space<vmem>>, vector<1x16xf32>,
    } else {
    }
    %c0 = arith.constant 0 : index
    %c0_1 = arith.constant 0 : index
    %3 = vector.load %arg1[%c0, %c0_1] : memref<8x32xf32, #tpu.memory_space<vmem>>, vector<8x32xf32>
    %c0_2 = arith.constant 0 : index
    %c0_3 = arith.constant 0 : index
    %4 = vector.load %arg2[%c0_2, %c0_3] : memref<8x32xf32, #tpu.memory_space<vmem>>, vector<8x32xf32>
    %5 = tpu.concatenate %3, %4 in 0 : vector<8x32xf32>, vector<8x32xf32> -> vector<16x32xf32>
    %c0_4 = arith.constant 0 : index
    %c0_5 = arith.constant 0 : index
    %6 = vector.load %arg4[%c0_4, %c0_5] : memref<16x16xf32, #tpu.memory_space<vmem>>, vector<16x16xf32>
    %cst = arith.constant dense<0.000000e+00> : vector<16x16xf32>
    %7 = tpu.matmul %5, %5, %cst {dimension_numbers = #tpu.dot_dimension_numbers<[1], [1], [0], [0], [0, 0, 1, 0], [], []>} : vector<16x32xf32>, vector<16x32xf32>, vector<16x16xf32> -> vector<16x16xf32>
    %8 = arith.addf %6, %7 : vector<16x16xf32>
    %c0_6 = arith.constant 0 : index
    %c0_7 = arith.constant 0 : index
    %9 = vector.load %arg4[%c0_6, %c0_7] : memref<16x16xf32, #tpu.memory_space<vmem>>, vector<16x16xf32>
    tpu.vector_store %arg4[%c0_6, %c0_7], %8 {strides = array<i32>} : memref<16x16xf32, #tpu.memory_space<vmem>>, vector<16x16xf32>,
    %10 = arith.mulf %5, %5 : vector<16x32xf32>
    %c0_8 = arith.constant 0 : index
    %c0_9 = arith.constant 0 : index
    %11 = vector.load %arg5[%c0_8, %c0_9] : memref<16x1xf32, #tpu.memory_space<vmem>>, vector<16x1xf32>
    %cst_10 = arith.constant dense<0.000000e+00> : vector<16xf32>
    %12 = vector.multi_reduction <add>, %10, %cst_10 [1] : vector<16x32xf32> to vector<16xf32>
    %13 = vector.shape_cast %12 : vector<16xf32> to vector<16x1xf32>
    %14 = arith.addf %11, %13 : vector<16x1xf32>
    %c0_11 = arith.constant 0 : index
    %c0_12 = arith.constant 0 : index
    %15 = vector.load %arg5[%c0_11, %c0_12] : memref<16x1xf32, #tpu.memory_space<vmem>>, vector<16x1xf32>
    tpu.vector_store %arg5[%c0_11, %c0_12], %14 {strides = array<i32>} : memref<16x1xf32, #tpu.memory_space<vmem>>, vector<16x1xf32>,
    %c0_13 = arith.constant 0 : index
    %c0_14 = arith.constant 0 : index
    %16 = vector.load %arg6[%c0_13, %c0_14] : memref<1x16xf32, #tpu.memory_space<vmem>>, vector<1x16xf32>
    %cst_15 = arith.constant 1.000000e+00 : f32
    %17 = vector.broadcast %cst_15 : f32 to vector<1x32xf32>
    %cst_16 = arith.constant dense<0.000000e+00> : vector<1x16xf32>
    %18 = tpu.matmul %17, %10, %cst_16 {dimension_numbers = #tpu.dot_dimension_numbers<[1], [1], [0], [0], [0, 0, 1, 0], [], []>} : vector<1x32xf32>, vector<16x32xf32>, vector<1x16xf32> -> vector<1x16xf32>
    %19 = arith.addf %16, %18 : vector<1x16xf32>
    %c0_17 = arith.constant 0 : index
    %c0_18 = arith.constant 0 : index
    %20 = vector.load %arg6[%c0_17, %c0_18] : memref<1x16xf32, #tpu.memory_space<vmem>>, vector<1x16xf32>
    tpu.vector_store %arg6[%c0_17, %c0_18], %19 {strides = array<i32>} : memref<1x16xf32, #tpu.memory_space<vmem>>, vector<1x16xf32>,
    %c0_i32_19 = arith.constant 0 : i32
    %21 = arith.cmpi eq, %arg0, %c0_i32_19 : i32
    %22 = arith.extui %21 : i1 to i32
    %c0_i32_20 = arith.constant 0 : i32
    %23 = arith.cmpi ne, %22, %c0_i32_20 : i32
    scf.if %23 {
      %c0_21 = arith.constant 0 : index
      %c0_22 = arith.constant 0 : index
      %24 = vector.load %arg6[%c0_21, %c0_22] : memref<1x16xf32, #tpu.memory_space<vmem>>, vector<1x16xf32>
      %cst_23 = arith.constant 9.99999996E-13 : f32
      %25 = vector.broadcast %cst_23 : f32 to vector<1x16xf32>
      %26 = arith.maximumf %24, %25 : vector<1x16xf32>
      %27 = math.rsqrt %26 : vector<1x16xf32>
      %cst_24 = arith.constant 9.99999996E-13 : f32
      %cst_25 = arith.constant 0.000000e+00 : f32
      %cst_26 = arith.constant 0.000000e+00 : f32
      %c0_i32_27 = arith.constant 0 : i32
      %c16_i32 = arith.constant 16 : i32
      %28 = arith.muli %c0_i32_27, %c16_i32 : i32
      %29 = tpu.assume_multiple %28, 16 : i32
      %30 = arith.index_cast %29 : i32 to index
      %c0_28 = arith.constant 0 : index
      %31 = vector.load %arg4[%30, %c0_28] : memref<16x16xf32, #tpu.memory_space<vmem>>, vector<16x16xf32>
      %32 = arith.index_cast %29 : i32 to index
      %c0_29 = arith.constant 0 : index
      %33 = vector.load %arg5[%32, %c0_29] : memref<16x1xf32, #tpu.memory_space<vmem>>, vector<16x1xf32>
      %34 = vector.broadcast %cst_24 : f32 to vector<16x1xf32>
      %35 = arith.maximumf %33, %34 : vector<16x1xf32>
      %36 = math.rsqrt %35 : vector<16x1xf32>
      %cst_30 = arith.constant 2.000000e+00 : f32
      %37 = vector.broadcast %cst_30 : f32 to vector<16x1xf32>
      %38 = arith.mulf %36, %37 : vector<16x1xf32>
      %39 = vector.broadcast %38 : vector<16x1xf32> to vector<16x16xf32>
      %40 = arith.mulf %31, %39 : vector<16x16xf32>
      %41 = vector.broadcast %27 : vector<1x16xf32> to vector<16x16xf32>
      %42 = arith.mulf %40, %41 : vector<16x16xf32>
      %43 = tpu.iota {dimensions = array<i32: 0>} : vector<16x16xi32>
      %44 = vector.broadcast %29 : i32 to vector<16x16xi32>
      %45 = arith.addi %43, %44 : vector<16x16xi32>
      %46 = tpu.iota {dimensions = array<i32: 1>} : vector<16x16xi32>
      %c8_i32 = arith.constant 8 : i32
      %47 = vector.broadcast %c8_i32 : i32 to vector<16x16xi32>
      %48 = arith.addi %45, %47 : vector<16x16xi32>
      %49 = arith.cmpi eq, %46, %48 : vector<16x16xi32>
      %cst_31 = arith.constant 0.000000e+00 : f32
      %50 = vector.broadcast %cst_31 : f32 to vector<16x16xf32>
      %51 = arith.select %49, %42, %50 : vector<16x16xi1>, vector<16x16xf32>
      %52 = vector.shape_cast %51 : vector<16x16xf32> to vector<1x16x16xf32>
      %cst_32 = arith.constant dense<0.000000e+00> : vector<1xf32>
      %53 = vector.multi_reduction <add>, %52, %cst_32 [1, 2] : vector<1x16x16xf32> to vector<1xf32>
      %54 = vector.shape_cast %53 : vector<1xf32> to vector<1x1x1xf32>
      %55 = vector.extract %54[0, 0, 0] : f32 from vector<1x1x1xf32>
      %56 = arith.addf %cst_26, %55 : f32
      %57 = arith.cmpi eq, %46, %45 : vector<16x16xi32>
      %cst_33 = arith.constant -1.000000e+30 : f32
      %58 = vector.broadcast %cst_33 : f32 to vector<16x16xf32>
      %59 = arith.select %57, %58, %42 : vector<16x16xi1>, vector<16x16xf32>
      %cst_34 = arith.constant dense<0xFF800000> : vector<16xf32>
      %60 = vector.multi_reduction <maximumf>, %59, %cst_34 [1] : vector<16x16xf32> to vector<16xf32>
      %61 = vector.shape_cast %60 : vector<16xf32> to vector<16x1xf32>
      %62 = vector.broadcast %61 : vector<16x1xf32> to vector<16x16xf32>
      %63 = arith.subf %59, %62 : vector<16x16xf32>
      %64 = math.exp %63 : vector<16x16xf32>
      %cst_35 = arith.constant dense<0.000000e+00> : vector<16xf32>
      %65 = vector.multi_reduction <add>, %64, %cst_35 [1] : vector<16x16xf32> to vector<16xf32>
      %66 = vector.shape_cast %65 : vector<16xf32> to vector<16x1xf32>
      %67 = math.log %66 : vector<16x1xf32>
      %68 = arith.addf %61, %67 : vector<16x1xf32>
      %69 = vector.shape_cast %68 : vector<16x1xf32> to vector<1x16x1xf32>
      %cst_36 = arith.constant dense<0.000000e+00> : vector<1xf32>
      %70 = vector.multi_reduction <add>, %69, %cst_36 [1, 2] : vector<1x16x1xf32> to vector<1xf32>
      %71 = vector.shape_cast %70 : vector<1xf32> to vector<1x1x1xf32>
      %72 = vector.extract %71[0, 0, 0] : f32 from vector<1x1x1xf32>
      %73 = arith.addf %cst_25, %72 : f32
      %c1_i32 = arith.constant 1 : i32
      %cst_37 = arith.constant 2.000000e+00 : f32
      %74 = arith.mulf %cst_37, %56 : f32
      %75 = arith.subf %73, %74 : f32
      %cst_38 = arith.constant 1.600000e+01 : f32
      %76 = arith.divf %75, %cst_38 : f32
      %77 = vector.broadcast %76 : f32 to vector<1x128xf32>
      %c0_39 = arith.constant 0 : index
      %c0_40 = arith.constant 0 : index
      %78 = vector.load %arg3[%c0_39, %c0_40] : memref<1x128xf32, #tpu.memory_space<vmem>>, vector<1x128xf32>
      tpu.vector_store %arg3[%c0_39, %c0_40], %77 {strides = array<i32>} : memref<1x128xf32, #tpu.memory_space<vmem>>, vector<1x128xf32>,
    } else {
    }
    return
  }
  func.func @transform_0(%arg0: i32) -> (i32, i32) {
    %c0_i32 = arith.constant 0 : i32
    %c0_i32_0 = arith.constant 0 : i32
    return %c0_i32, %arg0 : i32, i32
  }
  func.func @transform_1(%arg0: i32) -> (i32, i32) {
    %c0_i32 = arith.constant 0 : i32
    %c0_i32_0 = arith.constant 0 : i32
    return %c0_i32, %arg0 : i32, i32
  }
  func.func @transform_2(%arg0: i32) -> (i32, i32) {
    %c0_i32 = arith.constant 0 : i32
    %c0_i32_0 = arith.constant 0 : i32
    %c0_i32_1 = arith.constant 0 : i32
    return %c0_i32, %c0_i32_0 : i32, i32
  }
}

</mosaic_0001>

<llo_original>
// kernel: tpu_custom_call.1
$region0: #{tpu_custom_call.1}
  #allocation0 [shape = 'u32[]', space=smem, size = 0x4, offset = 0x4, fixed_abs, tag = 'smem constant byte address 0x4 - core index']
  #allocation1 [shape = 'u32[144,128]{1,0:T(1,128)}', space=vmem, size = 0x12000, scoped, tag = 'internal scratch']
  #allocation2 [shape = 'f32[16,16]{1,0:T(8,128)}', space=vmem, size = 0x2000, scoped, tag = 'scratch operand']
  #allocation3 [shape = 'f32[16,1]{1,0:T(8,128)}', space=vmem, size = 0x2000, scoped, tag = 'scratch operand']
  #allocation4 [shape = 'f32[1,16]{1,0:T(1,128)}', space=vmem, size = 0x200, scoped, tag = 'scratch operand']
  %s0 = inlined_call_operand.hbm [shape: f32[8,32], index: 0, kind: input, shape index: {}]
  %s1 = inlined_call_operand.hbm [shape: f32[8,32], index: 1, kind: input, shape index: {}]
  %s2 = inlined_call_operand.hbm [shape: f32[1,128], index: 2, kind: output, shape index: {}]
  %s3 = sld [smem:[#allocation0]]
  $region34: #{tpu_custom_call.1} parent=0
    _
  %s5 = ssub.s32 1, %s3
  %s6 = scalar_select 0, %s5, %s3
  $region1: #{tpu_custom_call.1} parent=0
    #allocation5 [shape = 'u8[4096]{0}', space=vmem, size = 0x1000, scoped, tag = 'input window, operand 0, single buffered']
    #allocation6 [shape = 's32[1]{0}', space=sflag, size = 0x4, scoped, tag = 'scoped memory for tpu_custom_call.1']
    #allocation7 [shape = 's32[1]{0}', space=sflag, size = 0x4, scoped, tag = 'scoped memory for tpu_custom_call.1']
    #allocation8 [shape = 'u8[4096]{0}', space=vmem, size = 0x1000, scoped, tag = 'input window, operand 1, single buffered']
    #allocation9 [shape = 's32[1]{0}', space=sflag, size = 0x4, scoped, tag = 'scoped memory for tpu_custom_call.1']
    #allocation10 [shape = 'u8[512]{0}', space=vmem, size = 0x400, scoped, tag = 'output window, operand 0, single buffered']
    %7 = vsyncpa [#allocation6], 0
    %8 = vsyncpa [#allocation9], 0
    %9 = vsyncpa [#allocation7], 0
    // Predicated region
    $region2: #{tpu_custom_call.1} parent=1 // pred_check
      _
    $region3: #{tpu_custom_call.1} parent=1 // pred_check_branch
      %11 = sbr.rel (0) target = $region5
    $region4: #{tpu_custom_call.1} parent=1 // pred_region
      %s13 = ssub.s32 128, 128
      %14 = vsyncadd [#allocation6], %s13
      %s16 = sshll.u32 [#allocation5], 4
      %s17 = int_to_ptr.vmem [resolvable:$true] %s16
      %19 = dma.hbm_to_vmem [thread:$0]  %s0, 128, %s17, [#allocation6]
    $region5: #{tpu_custom_call.1} parent=1 // pred_fallthru
      _
    // Predicated region
    $region6: #{tpu_custom_call.1} parent=1 // pred_check
      _
    $region7: #{tpu_custom_call.1} parent=1 // pred_check_branch
      %21 = sbr.rel (0) target = $region9
    $region8: #{tpu_custom_call.1} parent=1 // pred_region
      %s23 = ssub.s32 128, 128
      %24 = vsyncadd [#allocation9], %s23
      %s26 = sshll.u32 [#allocation8], 4
      %s27 = int_to_ptr.vmem [resolvable:$true] %s26
      %29 = dma.hbm_to_vmem [thread:$0]  %s1, 128, %s27, [#allocation9]
    $region9: #{tpu_custom_call.1} parent=1 // pred_fallthru
      _
    // Predicated region
    $region10: #{tpu_custom_call.1} parent=1 // pred_check
      _
    $region11: #{tpu_custom_call.1} parent=1 // pred_check_branch
      %31 = sbr.rel (0) target = $region13
    $region12: #{tpu_custom_call.1} parent=1 // pred_region
      %32 = dma.done [#allocation6], 128
    $region13: #{tpu_custom_call.1} parent=1 // pred_fallthru
      _
    // Predicated region
    $region14: #{tpu_custom_call.1} parent=1 // pred_check
      _
    $region15: #{tpu_custom_call.1} parent=1 // pred_check_branch
      %34 = sbr.rel (0) target = $region17
    $region16: #{tpu_custom_call.1} parent=1 // pred_region
      %35 = dma.done [#allocation9], 128
    $region17: #{tpu_custom_call.1} parent=1 // pred_fallthru
      _
    %p36 = scmp.eq.s32.totalorder 0, 0
    // Predicated region
    $region18: #{tpu_custom_call.1} parent=1 // pred_check
      %p37 = pneg %p36
    $region19: #{tpu_custom_call.1} parent=1 // pred_check_branch
      %39 = sbr.rel (%p37) target = $region21
    $region20: #{tpu_custom_call.1} parent=1 // pred_region
      %vm40 = vcmask 130048
      %41 = vst.msk [vmem:[#allocation2] sm:$0xff] %vm40, 0.0
      %42 = vst.msk [vmem:[#allocation2 + $0x8] sm:$0xff] %vm40, 0.0
      %vm43 = vcmask 7168
      %44 = vst.msk [vmem:[#allocation3] sm:$0xff] %vm43, 0.0
      %45 = vst.msk [vmem:[#allocation3 + $0x8] sm:$0xff] %vm43, 0.0
      %vm46 = vcmask 122880
      %47 = vst.msk [vmem:[#allocation4] sm:$0x1] %vm46, 0.0
    $region21: #{tpu_custom_call.1} parent=1 // pred_fallthru
      _
    %v48 = vld [vmem:[#allocation5] sm:$0xff]
    %v49 = vld [vmem:[#allocation8] sm:$0xff]
    %v50 = vld [vmem:[#allocation2] sm:$0xff]
    %v51 = vld [vmem:[#allocation2 + $0x8] sm:$0xff]
    %vm52 = vcmask 261120
    %v54 = vsel %vm52, %v48, 0
    %v57 = vsel %vm52, %v49, 0
    %59 = vmatprep.subr.mxu0 0.0
    %60 = vmatpush1.xpose.msra.mxu0 %v54
    %61 = vmatprep.subr.mxu0 0.0
    %62 = vmatpush1.xpose.msra.mxu0 %v57
    %63 = vmatprep.subr.mxu0 0.0
    %64 = vmatpush1.xpose.msra.mxu0 0.0
    %65 = vmatprep.subr.mxu0 0.0
    %66 = vmatpush1.xpose.msra.mxu0 0.0
    %67 = vmatprep.subr.mxu0 0.0
    %68 = vmatpush1.xpose.msra.mxu0 0.0
    %69 = vmatprep.subr.mxu0 0.0
    %70 = vmatpush1.xpose.msra.mxu0 0.0
    %71 = vmatprep.subr.mxu0 0.0
    %72 = vmatpush1.xpose.msra.mxu0 0.0
    %73 = vmatprep.subr.mxu0 0.0
    %74 = vmatpush1.xpose.msra.mxu0 0.0
    %75 = vmatprep.subr.mxu0 0.0
    %76 = vmatpush1.xpose.msra.mxu0 0.0
    %77 = vmatprep.subr.mxu0 0.0
    %78 = vmatpush1.xpose.msra.mxu0 0.0
    %79 = vmatprep.subr.mxu0 0.0
    %80 = vmatpush1.xpose.msra.mxu0 0.0
    %81 = vmatprep.subr.mxu0 0.0
    %82 = vmatpush1.xpose.msra.mxu0 0.0
    %83 = vmatprep.subr.mxu0 0.0
    %84 = vmatpush1.xpose.msra.mxu0 0.0
    %85 = vmatprep.subr.mxu0 0.0
    %86 = vmatpush1.xpose.msra.mxu0 0.0
    %87 = vmatprep.subr.mxu0 0.0
    %88 = vmatpush1.xpose.msra.mxu0 0.0
    %89 = vmatprep.subr.mxu0 0.0
    %90 = vmatpush1.xpose.msra.mxu0 0.0
    %91 = vmatprep.subr.mxu0 0.0
    %92 = vmatpush1.xpose.msra.mxu0 0.0
    %93 = vmatprep.subr.mxu0 0.0
    %94 = vmatpush1.xpose.msra.mxu0 0.0
    %95 = vmatprep.subr.mxu0 0.0
    %96 = vmatpush1.xpose.msra.mxu0 0.0
    %97 = vmatprep.subr.mxu0 0.0
    %98 = vmatpush1.xpose.msra.mxu0 0.0
    %99 = vmatprep.subr.mxu0 0.0
    %100 = vmatpush1.xpose.msra.mxu0 0.0
    %101 = vmatprep.subr.mxu0 0.0
    %102 = vmatpush1.xpose.msra.mxu0 0.0
    %103 = vmatprep.subr.mxu0 0.0
    %104 = vmatpush1.xpose.msra.mxu0 0.0
    %105 = vmatprep.subr.mxu0 0.0
    %106 = vmatpush1.xpose.msra.mxu0 0.0
    %107 = vmatprep.subr.mxu0 0.0
    %108 = vmatpush1.xpose.msra.mxu0 0.0
    %109 = vmatprep.subr.mxu0 0.0
    %110 = vmatpush1.xpose.msra.mxu0 0.0
    %111 = vmatprep.subr.mxu0 0.0
    %112 = vmatpush1.xpose.msra.mxu0 0.0
    %113 = vmatprep.subr.mxu0 0.0
    %114 = vmatpush1.xpose.msra.mxu0 0.0
    %115 = vmatprep.subr.mxu0 0.0
    %116 = vmatpush1.xpose.msra.mxu0 0.0
    %117 = vmatprep.subr.mxu0 0.0
    %118 = vmatpush1.xpose.msra.mxu0 0.0
    %119 = vmatprep.subr.mxu0 0.0
    %120 = vmatpush1.xpose.msra.mxu0 0.0
    %121 = vmatprep.subr.mxu0 0.0
    %122 = vmatpush1.xpose.msra.mxu0 0.0
    %123 = vmatprep.mubr.f32.mxu0 0.0
    %124 = vmatmul.mubr.f32.gmra.mrb[0].mxu0 %v54
    %v125 = vpop.f32.mrb[0].mxu0
    %v126 = vadd.f32 0.0, %v125
    %v127 = vpop.f32.mrb[0].mxu0
    %128 = vmatprep.mubr.f32.mxu0 0.0
    %129 = vmatmul.mubr.f32.gmra.mrb[0].mxu0 %v57
    %v130 = vpop.f32.mrb[0].mxu0
    %v131 = vadd.f32 0.0, %v130
    %v132 = vpop.f32.mrb[0].mxu0
    %133 = vdwg.mxu0
    %v134 = vadd.f32 %v50, %v126
    %v135 = vadd.f32 %v51, %v131
    %vm136 = vcmask 130048
    %137 = vst.msk [vmem:[#allocation2] sm:$0xff] %vm136, %v134
    %138 = vst.msk [vmem:[#allocation2 + $0x8] sm:$0xff] %vm136, %v135
    %v139 = vmul.f32 %v48, %v48
    %v140 = vmul.f32 %v49, %v49
    %v141 = vld [vmem:[#allocation3] sm:$0xff]
    %v142 = vld [vmem:[#allocation3 + $0x8] sm:$0xff]
    %v143 = vsel %vm52, %v139, 0.0
    %144 = vadd.xlane.f32.xlu0 %v143
    %v145 = vpop.xlane.xlu0 %144
    %v146 = vsel %vm52, %v140, 0.0
    %147 = vadd.xlane.f32.xlu0 %v146
    %v148 = vpop.xlane.xlu0 %147
    %v149 = vadd.f32 %v141, %v145
    %v150 = vadd.f32 %v142, %v148
    %vm151 = vcmask 7168
    %152 = vst.msk [vmem:[#allocation3] sm:$0xff] %vm151, %v149
    %153 = vst.msk [vmem:[#allocation3 + $0x8] sm:$0xff] %vm151, %v150
    %v154 = vld [vmem:[#allocation4] sm:$0x1]
    %v156 = vsel %vm52, 1.0, 0
    %v159 = vsel %vm52, %v139, 0
    %v162 = vsel %vm52, %v140, 0
    %164 = vmatprep.subr.mxu0 0.0
    %165 = vmatpush1.xpose.msra.mxu0 %v159
    %166 = vmatprep.subr.mxu0 0.0
    %167 = vmatpush1.xpose.msra.mxu0 %v162
    %168 = vmatprep.subr.mxu0 0.0
    %169 = vmatpush1.xpose.msra.mxu0 0.0
    %170 = vmatprep.subr.mxu0 0.0
    %171 = vmatpush1.xpose.msra.mxu0 0.0
    %172 = vmatprep.subr.mxu0 0.0
    %173 = vmatpush1.xpose.msra.mxu0 0.0
    %174 = vmatprep.subr.mxu0 0.0
    %175 = vmatpush1.xpose.msra.mxu0 0.0
    %176 = vmatprep.subr.mxu0 0.0
    %177 = vmatpush1.xpose.msra.mxu0 0.0
    %178 = vmatprep.subr.mxu0 0.0
    %179 = vmatpush1.xpose.msra.mxu0 0.0
    %180 = vmatprep.subr.mxu0 0.0
    %181 = vmatpush1.xpose.msra.mxu0 0.0
    %182 = vmatprep.subr.mxu0 0.0
    %183 = vmatpush1.xpose.msra.mxu0 0.0
    %184 = vmatprep.subr.mxu0 0.0
    %185 = vmatpush1.xpose.msra.mxu0 0.0
    %186 = vmatprep.subr.mxu0 0.0
    %187 = vmatpush1.xpose.msra.mxu0 0.0
    %188 = vmatprep.subr.mxu0 0.0
    %189 = vmatpush1.xpose.msra.mxu0 0.0
    %190 = vmatprep.subr.mxu0 0.0
    %191 = vmatpush1.xpose.msra.mxu0 0.0
    %192 = vmatprep.subr.mxu0 0.0
    %193 = vmatpush1.xpose.msra.mxu0 0.0
    %194 = vmatprep.subr.mxu0 0.0
    %195 = vmatpush1.xpose.msra.mxu0 0.0
    %196 = vmatprep.subr.mxu0 0.0
    %197 = vmatpush1.xpose.msra.mxu0 0.0
    %198 = vmatprep.subr.mxu0 0.0
    %199 = vmatpush1.xpose.msra.mxu0 0.0
    %200 = vmatprep.subr.mxu0 0.0
    %201 = vmatpush1.xpose.msra.mxu0 0.0
    %202 = vmatprep.subr.mxu0 0.0
    %203 = vmatpush1.xpose.msra.mxu0 0.0
    %204 = vmatprep.subr.mxu0 0.0
    %205 = vmatpush1.xpose.msra.mxu0 0.0
    %206 = vmatprep.subr.mxu0 0.0
    %207 = vmatpush1.xpose.msra.mxu0 0.0
    %208 = vmatprep.subr.mxu0 0.0
    %209 = vmatpush1.xpose.msra.mxu0 0.0
    %210 = vmatprep.subr.mxu0 0.0
    %211 = vmatpush1.xpose.msra.mxu0 0.0
    %212 = vmatprep.subr.mxu0 0.0
    %213 = vmatpush1.xpose.msra.mxu0 0.0
    %214 = vmatprep.subr.mxu0 0.0
    %215 = vmatpush1.xpose.msra.mxu0 0.0
    %216 = vmatprep.subr.mxu0 0.0
    %217 = vmatpush1.xpose.msra.mxu0 0.0
    %218 = vmatprep.subr.mxu0 0.0
    %219 = vmatpush1.xpose.msra.mxu0 0.0
    %220 = vmatprep.subr.mxu0 0.0
    %221 = vmatpush1.xpose.msra.mxu0 0.0
    %222 = vmatprep.subr.mxu0 0.0
    %223 = vmatpush1.xpose.msra.mxu0 0.0
    %224 = vmatprep.subr.mxu0 0.0
    %225 = vmatpush1.xpose.msra.mxu0 0.0
    %226 = vmatprep.subr.mxu0 0.0
    %227 = vmatpush1.xpose.msra.mxu0 0.0
    %228 = vmatprep.mubr.f32.mxu0 0.0
    %229 = vmatmul.mubr.f32.gmra.mrb[0].mxu0 %v156
    %v230 = vpop.f32.mrb[0].mxu0
    %v231 = vadd.f32 0.0, %v230
    %v232 = vpop.f32.mrb[0].mxu0
    %233 = vdwg.mxu0
    %v234 = vadd.f32 %v154, %v231
    %vm235 = vcmask 122880
    %236 = vst.msk [vmem:[#allocation4] sm:$0x1] %vm235, %v234
    // Predicated region
    $region22: #{tpu_custom_call.1} parent=1 // pred_check
      %p237 = pneg %p36
    $region23: #{tpu_custom_call.1} parent=1 // pred_check_branch
      %239 = sbr.rel (%p237) target = $region25
    $region24: #{tpu_custom_call.1} parent=1 // pred_region
      %v240 = vld [vmem:[#allocation4] sm:$0x1]
      %v241 = vmax.f32 %v240, 1e-12
      %v242 = vrsqrt.pop %v241
      %v243 = vld [vmem:[#allocation2] sm:$0xff]
      %v244 = vld [vmem:[#allocation2 + $0x8] sm:$0xff]
      %v245 = vld [vmem:[#allocation3] sm:$0xff]
      %v246 = vld [vmem:[#allocation3 + $0x8] sm:$0xff]
      %v247 = vmax.f32 %v245, 1e-12
      %v248 = vmax.f32 %v246, 1e-12
      %v249 = vrsqrt.pop %v247
      %v250 = vrsqrt.pop %v248
      %v251 = vmul.f32 %v249, 2.0
      %v252 = vmul.f32 %v250, 2.0
      %254 = vset.pattern.permute.xlu0 0
      %255 = vperm.xlu0 %254, %v251
      %v256 = vpop.permute.xlu0 %255
      %259 = vset.pattern.permute.xlu0 0
      %260 = vperm.xlu0 %259, %v252
      %v261 = vpop.permute.xlu0 %260
      %v263 = vmul.f32 %v243, %v256
      %v264 = vmul.f32 %v244, %v261
      %v266 = vlaneseq
      %v267 = vshrl.u32 %v266, 7
      %v268 = vsub.s32 0, %v267
      %v269 = vrot.slane %v242, %v268
      %v271 = vmul.f32 %v263, %v269
      %v272 = vmul.f32 %v264, %v269
      %v273 = vlaneseq
      %v274 = vshrl.u32 %v273, 7
      %v275 = vadd.s32 %v274, 8
      %v276 = vstv 0
      %v277 = vadd.s32 %v274, %v276
      %v278 = vadd.s32 %v275, %v276
      %v279 = vlaneseq
      %v280 = vand.u32 %v279, 127
      %v281 = vadd.s32 %v277, 8
      %v282 = vadd.s32 %v278, 8
      %vm283 = vcmp.eq.s32.totalorder %v280, %v281
      %vm284 = vcmp.eq.s32.totalorder %v280, %v282
      %v285 = vsel %vm283, %v271, 0.0
      %v286 = vsel %vm284, %v272, 0.0
      %v287 = vsel %vm136, %v285, 0.0
      %v288 = vsel %vm136, %v286, 0.0
      %v289 = vadd.f32 %v287, %v288
      %290 = vadd.xlane.f32.xlu0 %v289
      %v291 = vpop.xlane.xlu0 %290
      %v292 = vrot.slane %v291, 4
      %v293 = vadd.f32 %v291, %v292
      %v294 = vrot.slane %v293, 2
      %v295 = vadd.f32 %v293, %v294
      %v296 = vrot.slane %v295, 1
      %v297 = vadd.f32 %v295, %v296
      %s298 = vtos %v297
      %s299 = sadd.f32 %s298, 0.0
      %vm300 = vcmp.eq.s32.totalorder %v280, %v277
      %vm301 = vcmp.eq.s32.totalorder %v280, %v278
      %v302 = vsel %vm300, -1e+30, %v271
      %v303 = vsel %vm301, -1e+30, %v272
      %v304 = vsel %vm136, %v302, -inf
      %305 = vmax.xlane.f32.xlu0 %v304
      %v306 = vpop.xlane.xlu0 %305
      %v307 = vsel %vm136, %v303, -inf
      %308 = vmax.xlane.f32.xlu0 %v307
      %v309 = vpop.xlane.xlu0 %308
      %v310 = vsub.f32 %v302, %v306
      %v311 = vsub.f32 %v303, %v309
      %v312 = vmul.f32 %v310, 1.442695
      %v313 = vpow.pop %v312
      %v314 = vmul.f32 %v311, 1.442695
      %v315 = vpow.pop %v314
      %v316 = vsel %vm136, %v313, 0.0
      %317 = vadd.xlane.f32.xlu0 %v316
      %v318 = vpop.xlane.xlu0 %317
      %v319 = vsel %vm136, %v315, 0.0
      %320 = vadd.xlane.f32.xlu0 %v319
      %v321 = vpop.xlane.xlu0 %320
      %v322 = vlog2.pop %v318
      %v323 = vmul.f32 %v322, 0.6931472
      %v324 = vlog2.pop %v321
      %v325 = vmul.f32 %v324, 0.6931472
      %v326 = vadd.f32 %v306, %v323
      %v327 = vadd.f32 %v309, %v325
      %v328 = vsel %vm151, %v326, 0.0
      %v329 = vsel %vm151, %v327, 0.0
      %v330 = vadd.f32 %v328, %v329
      %331 = vadd.xlane.f32.xlu0 %v330
      %v332 = vpop.xlane.xlu0 %331
      %v333 = vrot.slane %v332, 4
      %v334 = vadd.f32 %v332, %v333
      %v335 = vrot.slane %v334, 2
      %v336 = vadd.f32 %v334, %v335
      %v337 = vrot.slane %v336, 1
      %v338 = vadd.f32 %v336, %v337
      %s339 = vtos %v338
      %s340 = sadd.f32 %s339, 0.0
      %s341 = smul.f32 %s299, 2.0
      %s342 = ssub.f32 %s340, %s341
      %v343 = vrcp.pop 16.0
      %s344 = vtos %v343
      %s345 = smul.f32 %s342, %s344
      %v346 = vstv %s345
      %347 = vst [vmem:[#allocation10] sm:$0x1] %v346
    $region25: #{tpu_custom_call.1} parent=1 // pred_fallthru
      _
    // Predicated region
    $region26: #{tpu_custom_call.1} parent=1 // pred_check
      _
    $region27: #{tpu_custom_call.1} parent=1 // pred_check_branch
      %349 = sbr.rel (0) target = $region29
    $region28: #{tpu_custom_call.1} parent=1 // pred_region
      %s351 = ssub.s32 16, 16
      %352 = vsyncadd [#allocation7], %s351
      %s354 = sshll.u32 [#allocation10], 4
      %s355 = int_to_ptr.vmem [resolvable:$true] %s354
      %357 = dma.vmem_to_hbm [thread:$0]  %s355, 16, %s2, [#allocation7]
    $region29: #{tpu_custom_call.1} parent=1 // pred_fallthru
      _
    // Predicated region
    $region30: #{tpu_custom_call.1} parent=1 // pred_check
      _
    $region31: #{tpu_custom_call.1} parent=1 // pred_check_branch
      %359 = sbr.rel (0) target = $region33
    $region32: #{tpu_custom_call.1} parent=1 // pred_region
      %360 = dma.done [#allocation7], 16
    $region33: #{tpu_custom_call.1} parent=1 // pred_fallthru
      _
    %361 = vsyncpa [#allocation6], 1
    %362 = vsyncpa [#allocation9], 1
    %363 = vsyncpa [#allocation7], 1

</llo_original>
